<compile_context>
chip_gen: v6e
topology: v6e:2x2x1
jax: 0.10.0
libtpu: 0.0.40
codegen_flags: <defaults>
</compile_context>

<pallas_src>
import jax
import jax.numpy as jnp
from jax import lax
from jax.experimental import pallas as pl
from jax.experimental.pallas import tpu as pltpu


def _round_up(n, m):
    return ((n + m - 1) // m) * m


def _vmem_capacity_bytes():
    try:
        return int(pltpu.get_tpu_info().vmem_capacity_bytes)
    except Exception:
        return 128 << 20  # v5e/v6e physical VMEM; conservative fallback


# --------------------------------------------------------------------------
# Kernels
# --------------------------------------------------------------------------
def _encode_kernel(x_ref, wenc_ref, benc_ref, whead_ref, bhead_ref, reps_ref):
    """Resident-weight tile: dense -> tanh -> head -> L2 normalize.

    x_ref:     (Bt, Hp)  first-token embeddings (compute dtype)
    wenc_ref:  (Hp, Hp)  synthetic backbone weight (compute dtype, single-buffered)
    benc_ref:  (1, Hp)   backbone bias (f32)
    whead_ref: (Hp, Dp)  LinearHead weight (compute dtype, single-buffered)
    bhead_ref: (1, Dp)   LinearHead bias (f32)
    reps_ref:  (Bt, Dp)  normalized output representations (f32)
    """
    hidden = jnp.tanh(
        jnp.dot(x_ref[...], wenc_ref[...], preferred_element_type=jnp.float32)
        + benc_ref[...])
    reps = (jnp.dot(hidden.astype(whead_ref.dtype), whead_ref[...],
                    preferred_element_type=jnp.float32)
            + bhead_ref[...])
    sq = jnp.sum(reps * reps, axis=-1, keepdims=True)
    reps_ref[...] = reps * lax.rsqrt(jnp.maximum(sq, 1e-24))


def _encode_kernel_ktiled(x_ref, wenc_ref, benc_ref, whead_ref, bhead_ref,
                          reps_ref, hid_acc):
    """Weight-streaming tile: W_enc streamed along its contraction dim.

    x_ref:     (Bt, tk)   K-slice of first-token embeddings
    wenc_ref:  (tk, Hp)   K-slab of backbone weight
    hid_acc:   (Bt, Hp)   f32 VMEM accumulator for the backbone matmul
    """
    k = pl.program_id(1)

    @pl.when(k == 0)
    def _():
        hid_acc[...] = jnp.zeros_like(hid_acc)

    hid_acc[...] += jnp.dot(x_ref[...], wenc_ref[...],
                            preferred_element_type=jnp.float32)

    @pl.when(k == pl.num_programs(1) - 1)
    def _():
        hidden = jnp.tanh(hid_acc[...] + benc_ref[...])
        reps = (jnp.dot(hidden.astype(whead_ref.dtype), whead_ref[...],
                        preferred_element_type=jnp.float32)
                + bhead_ref[...])
        sq = jnp.sum(reps * reps, axis=-1, keepdims=True)
        reps_ref[...] = reps * lax.rsqrt(jnp.maximum(sq, 1e-24))


# --------------------------------------------------------------------------
# Wrapper
# --------------------------------------------------------------------------
def encode_first_token(x_first, w_enc_c, b_enc_f, w_head_c, b_head_f, *,
                       block_b=256, force_k_tiled=False):
    """x_first: [N, Hp] first-token embeddings (f32; padded to lane-dense Hp).
    Weights are pre-padded and pre-cast to the compute dtype.
    Returns [N, Dp] f32 L2-normalized reps."""
    N, Hp = x_first.shape
    Dp = w_head_c.shape[1]
    compute_dtype = w_enc_c.dtype
    itemsize = jnp.dtype(compute_dtype).itemsize

    # Batch tile: whole (packed) batch in one step when small, block_b rows
    # otherwise.  bf16 packs 16 sublanes per vreg, f32 packs 8.
    sub = 16 if itemsize < 4 else 8
    bt = min(block_b, _round_up(N, sub))
    n_pad = _round_up(N, bt)
    x_c = x_first.astype(compute_dtype)
    if n_pad != N:
        x_c = jnp.pad(x_c, ((0, n_pad - N), (0, 0)))
    n_b = n_pad // bt

    # Generation-aware VMEM budget (leave headroom for compiler scratch).
    vmem_budget = _vmem_capacity_bytes() - (16 << 20)

    # Resident-path footprint: weights single-buffered + double-buffered tiles.
    w_bytes = ((w_enc_c.size + w_head_c.size) * itemsize
               + b_enc_f.nbytes + b_head_f.nbytes)
    act_bytes = 2 * bt * (Hp * itemsize + Dp * 4)
    resident_need = w_bytes + act_bytes + (2 << 20)

    use_k_tiled = force_k_tiled or (resident_need > vmem_budget)

    if not use_k_tiled:
        vmem_limit = (int(min(resident_need, vmem_budget))
                      if resident_need > (16 << 20) else None)

        def _call(single_buffer):
            pm = dict(pipeline_mode=pl.Buffered(1)) if single_buffer else {}
            return pl.pallas_call(
                _encode_kernel,
                out_shape=jax.ShapeDtypeStruct((n_pad, Dp), jnp.float32),
                grid_spec=pltpu.PrefetchScalarGridSpec(
                    num_scalar_prefetch=0,
                    grid=(n_b,),
                    in_specs=[
                        pl.BlockSpec((bt, Hp), lambda i: (i, 0)),
                        # Constant index_maps -> fetched once; single-buffered.
                        pl.BlockSpec((Hp, Hp), lambda i: (0, 0), **pm),
                        pl.BlockSpec((1, Hp), lambda i: (0, 0), **pm),
                        pl.BlockSpec((Hp, Dp), lambda i: (0, 0), **pm),
                        pl.BlockSpec((1, Dp), lambda i: (0, 0), **pm),
                    ],
                    out_specs=pl.BlockSpec((bt, Dp), lambda i: (i, 0)),
                ),
                compiler_params=pltpu.CompilerParams(
                    dimension_semantics=("parallel",),
                    vmem_limit_bytes=vmem_limit,
                ),
            )(x_c, w_enc_c, b_enc_f, w_head_c, b_head_f)

        try:
            out = _call(True)
        except Exception:   # fall back to default buffering if Buffered(1) rejected
            out = _call(False)
        return out[:N]

    # K-tiled weight-streaming path (scales to H where a resident W_enc does
    # not fit the per-TC VMEM budget, e.g. v7x's 64 MiB).
    tk = next(t for t in (512, 256, 128) if Hp % t == 0)
    n_k = Hp // tk

    small_w_bytes = (w_head_c.size * itemsize + b_enc_f.nbytes + b_head_f.nbytes)
    ktiled_need = (small_w_bytes
                   + 2 * tk * Hp * itemsize            # double-buffered W_enc slabs
                   + 2 * bt * (tk * itemsize + Dp * 4)  # x / out tiles
                   + bt * Hp * 4                        # hidden accumulator
                   + (2 << 20))
    vmem_limit = (int(min(ktiled_need, vmem_budget))
                  if ktiled_need > (16 << 20) else None)

    def _call_k(single_buffer):
        pm = dict(pipeline_mode=pl.Buffered(1)) if single_buffer else {}
        return pl.pallas_call(
            _encode_kernel_ktiled,
            out_shape=jax.ShapeDtypeStruct((n_pad, Dp), jnp.float32),
            grid_spec=pltpu.PrefetchScalarGridSpec(
                num_scalar_prefetch=0,
                grid=(n_b, n_k),
                in_specs=[
                    pl.BlockSpec((bt, tk), lambda i, k: (i, k)),
                    pl.BlockSpec((tk, Hp), lambda i, k: (k, 0)),
                    pl.BlockSpec((1, Hp), lambda i, k: (0, 0), **pm),
                    pl.BlockSpec((Hp, Dp), lambda i, k: (0, 0), **pm),
                    pl.BlockSpec((1, Dp), lambda i, k: (0, 0), **pm),
                ],
                out_specs=pl.BlockSpec((bt, Dp), lambda i, k: (i, 0)),
                scratch_shapes=[pltpu.VMEM((bt, Hp), jnp.float32)],
            ),
            compiler_params=pltpu.CompilerParams(
                dimension_semantics=("parallel", "arbitrary"),
                vmem_limit_bytes=vmem_limit,
            ),
        )(x_c, w_enc_c, b_enc_f, w_head_c, b_head_f)

    try:
        out = _call_k(True)
    except Exception:
        out = _call_k(False)
    return out[:N]


# --------------------------------------------------------------------------
# Model
# --------------------------------------------------------------------------
class DRModelForInferencePallas:
    """JAX/Pallas port of DRModelForInference (tied encoders, shared LinearHead,
    feature='last_hidden_state', pooling='first', normalize=True)."""

    def __init__(self, vocab_size, hidden, proj_out, key,
                 compute_dtype=jnp.bfloat16, block_b=256, force_k_tiled=False):
        k0, k1, k2, k3, k4 = jax.random.split(key, 5)
        scale = 0.02
        # tied=True -> lm_q is lm_p, head_q is head_p (shared parameters).
        # f32 master copies (used by the reference / strict-check path).
        self.embed = scale * jax.random.normal(k0, (vocab_size, hidden), jnp.float32)
        self.w_enc = scale * jax.random.normal(k1, (hidden, hidden), jnp.float32)
        self.b_enc = scale * jax.random.normal(k2, (1, hidden), jnp.float32)
        self.w_head = scale * jax.random.normal(k3, (hidden, proj_out), jnp.float32)
        self.b_head = scale * jax.random.normal(k4, (1, proj_out), jnp.float32)
        self.hidden = hidden
        self.proj_out = proj_out
        self.compute_dtype = compute_dtype
        self.block_b = block_b
        self.force_k_tiled = force_k_tiled
        self._prepared_cache = {}

    def _prepared(self, dtype):
        """Pad H/D to lane-dense multiples of 128 and cast matmul operands to
        the compute dtype ONCE (cached), not per forward call."""
        key = jnp.dtype(dtype).name
        if key not in self._prepared_cache:
            Hp = _round_up(self.hidden, 128)
            Dp = _round_up(self.proj_out, 128)
            ph = Hp - self.hidden
            pd = Dp - self.proj_out
            w_enc = jnp.pad(self.w_enc, ((0, ph), (0, ph))).astype(dtype)
            b_enc = jnp.pad(self.b_enc, ((0, 0), (0, ph))).astype(jnp.float32)
            w_head = jnp.pad(self.w_head, ((0, ph), (0, pd))).astype(dtype)
            b_head = jnp.pad(self.b_head, ((0, 0), (0, pd))).astype(jnp.float32)
            self._prepared_cache[key] = (w_enc, b_enc, w_head, b_head, Hp, Dp)
        return self._prepared_cache[key]

    def _first_token_ids(self, items):
        # pooling == 'first' + per-token synthetic backbone => only token 0
        # of each sequence contributes.  (glue: gather stays in plain JAX)
        return items["input_ids"][:, 0]

    def forward(self, query=None, passage=None):
        if query is None and passage is None:
            return {"q_reps": None, "p_reps": None}

        w_enc, b_enc, w_head, b_head, Hp, _ = self._prepared(self.compute_dtype)

        # Fuse query + passage into ONE pallas_call (weights are tied): shared
        # weights DMA'd to VMEM once, MXU M dimension doubled.  Concatenate the
        # token IDs (tiny int vectors) rather than [N, H] embeddings so no
        # extra activation copy is materialized in HBM.
        ids, sizes = [], []
        if query is not None:
            qi = self._first_token_ids(query); ids.append(qi); sizes.append(qi.shape[0])
        if passage is not None:
            pi = self._first_token_ids(passage); ids.append(pi); sizes.append(pi.shape[0])
        ids_all = jnp.concatenate(ids, axis=0) if len(ids) > 1 else ids[0]

        x = self.embed[ids_all]                       # [N, H] f32
        if Hp != self.hidden:
            x = jnp.pad(x, ((0, 0), (0, Hp - self.hidden)))

        reps_all = encode_first_token(
            x, w_enc, b_enc, w_head, b_head,
            block_b=self.block_b, force_k_tiled=self.force_k_tiled)
        reps_all = reps_all[:, :self.proj_out]        # drop lane padding

        q_reps = p_reps = None
        off = 0
        if query is not None:
            q_reps = reps_all[off:off + sizes[0]]
            off += sizes[0]
        if passage is not None:
            p_reps = reps_all[off:]
        return {"q_reps": q_reps, "p_reps": p_reps}


# --------------------------------------------------------------------------
# Self-test
# --------------------------------------------------------------------------
if __name__ == "__main__":
    key = jax.random.PRNGKey(0)
    kq, kp, kparams = jax.random.split(key, 3)

    B, S, H, D, V = 2, 8, 128, 128, 64

    query = {
        "input_ids": jax.random.randint(kq, (B, S), 0, V, dtype=jnp.int32),
        "attention_mask": jnp.ones((B, S), jnp.int32),
    }
    passage = {
        "input_ids": jax.random.randint(kp, (B, S), 0, V, dtype=jnp.int32),
        "attention_mask": jnp.ones((B, S), jnp.int32),
    }

    # bf16 default compute for the matmuls (f32 master weights kept for the
    # strict verification path).
    model = DRModelForInferencePallas(vocab_size=V, hidden=H, proj_out=D, key=kparams)

    # Reference in plain JAX: full-sequence backbone, then first pooling
    # (also validates the algebraic first-token-only shortcut).
    def ref_encode(items):
        x = model.embed[items["input_ids"]]                      # [B, S, H]
        hidden = jnp.tanh(x @ model.w_enc + model.b_enc[0])
        reps = hidden[:, 0, :] @ model.w_head + model.b_head[0]
        nrm = jnp.maximum(jnp.linalg.norm(reps, axis=1, keepdims=True), 1e-12)
        return reps / nrm

    q_ref = ref_encode(query)
    p_ref = ref_encode(passage)

    # --- default bf16 compute path: loose check ---
    out = model.forward(query=query, passage=passage)
    q_reps = jax.block_until_ready(out["q_reps"])
    p_reps = jax.block_until_ready(out["p_reps"])
    assert q_reps.shape == (B, D) and p_reps.shape == (B, D)
    assert q_reps.dtype == jnp.float32 and p_reps.dtype == jnp.float32
    assert bool(jnp.all(jnp.isfinite(q_reps))) and bool(jnp.all(jnp.isfinite(p_reps)))
    assert float(jnp.max(jnp.abs(q_reps - q_ref))) < 5e-2
    assert float(jnp.max(jnp.abs(p_reps - p_ref))) < 5e-2

    # --- f32 compute path: strict check against the reference ---
    model.compute_dtype = jnp.float32
    out32 = model.forward(query=query, passage=passage)
    assert jnp.allclose(jax.block_until_ready(out32["q_reps"]), q_ref, atol=1e-5)
    assert jnp.allclose(jax.block_until_ready(out32["p_reps"]), p_ref, atol=1e-5)

    # --- K-tiled weight-streaming path (auto-selected for large H on v7x);
    #     forced here at small shapes to validate correctness. ---
    model.force_k_tiled = True
    outk = model.forward(query=query, passage=passage)
    assert jnp.allclose(jax.block_until_ready(outk["q_reps"]), q_ref, atol=1e-5)
    assert jnp.allclose(jax.block_until_ready(outk["p_reps"]), p_ref, atol=1e-5)
    model.force_k_tiled = False

    # --- query-only path (DROutput with one side None) ---
    out_q_only = model.forward(query=query, passage=None)
    assert out_q_only["p_reps"] is None
    jax.block_until_ready(out_q_only["q_reps"])

    print("KERNEL_OK")
</pallas_src>

<mosaic_0001>
module attributes {stable_mosaic.version = 11 : i64} {
  func.func @_encode_kernel(%arg0: i32, %arg1: memref<16x128xbf16, #tpu.memory_space<vmem>>, %arg2: memref<128x128xbf16, #tpu.memory_space<vmem>>, %arg3: memref<1x128xf32, #tpu.memory_space<vmem>>, %arg4: memref<128x128xbf16, #tpu.memory_space<vmem>>, %arg5: memref<1x128xf32, #tpu.memory_space<vmem>>, %arg6: memref<16x128xf32, #tpu.memory_space<vmem>>) attributes {dimension_semantics = [#tpu.dimension_semantics<parallel>], iteration_bounds = array<i64: 1>, scalar_prefetch = 0 : i64, scratch_operands = 0 : i64, tpu.core_type = #tpu.core_type<tc>, window_params = [{transform_indices = @transform_0, window_bounds = array<i64: 16, 128>}, {pipeline_mode = #tpu.pipeline_mode<synchronous>, transform_indices = @transform_1, window_bounds = array<i64: 128, 128>}, {pipeline_mode = #tpu.pipeline_mode<synchronous>, transform_indices = @transform_2, window_bounds = array<i64: 1, 128>}, {pipeline_mode = #tpu.pipeline_mode<synchronous>, transform_indices = @transform_3, window_bounds = array<i64: 128, 128>}, {pipeline_mode = #tpu.pipeline_mode<synchronous>, transform_indices = @transform_4, window_bounds = array<i64: 1, 128>}, {transform_indices = @transform_5, window_bounds = array<i64: 16, 128>}]} {
    %c0 = arith.constant 0 : index
    %c0_0 = arith.constant 0 : index
    %0 = vector.load %arg1[%c0, %c0_0] : memref<16x128xbf16, #tpu.memory_space<vmem>>, vector<16x128xbf16>
    %c0_1 = arith.constant 0 : index
    %c0_2 = arith.constant 0 : index
    %1 = vector.load %arg2[%c0_1, %c0_2] : memref<128x128xbf16, #tpu.memory_space<vmem>>, vector<128x128xbf16>
    %cst = arith.constant dense<0.000000e+00> : vector<16x128xf32>
    %2 = tpu.matmul %0, %1, %cst {dimension_numbers = #tpu.dot_dimension_numbers<[1], [0], [0], [1], [0, 0, 1, 1], [], []>} : vector<16x128xbf16>, vector<128x128xbf16>, vector<16x128xf32> -> vector<16x128xf32>
    %c0_3 = arith.constant 0 : index
    %c0_4 = arith.constant 0 : index
    %3 = vector.load %arg3[%c0_3, %c0_4] : memref<1x128xf32, #tpu.memory_space<vmem>>, vector<1x128xf32>
    %4 = vector.broadcast %3 : vector<1x128xf32> to vector<16x128xf32>
    %5 = arith.addf %2, %4 : vector<16x128xf32>
    %6 = math.tanh %5 : vector<16x128xf32>
    %7 = arith.truncf %6 : vector<16x128xf32> to vector<16x128xbf16>
    %c0_5 = arith.constant 0 : index
    %c0_6 = arith.constant 0 : index
    %8 = vector.load %arg4[%c0_5, %c0_6] : memref<128x128xbf16, #tpu.memory_space<vmem>>, vector<128x128xbf16>
    %cst_7 = arith.constant dense<0.000000e+00> : vector<16x128xf32>
    %9 = tpu.matmul %7, %8, %cst_7 {dimension_numbers = #tpu.dot_dimension_numbers<[1], [0], [0], [1], [0, 0, 1, 1], [], []>} : vector<16x128xbf16>, vector<128x128xbf16>, vector<16x128xf32> -> vector<16x128xf32>
    %c0_8 = arith.constant 0 : index
    %c0_9 = arith.constant 0 : index
    %10 = vector.load %arg5[%c0_8, %c0_9] : memref<1x128xf32, #tpu.memory_space<vmem>>, vector<1x128xf32>
    %11 = vector.broadcast %10 : vector<1x128xf32> to vector<16x128xf32>
    %12 = arith.addf %9, %11 : vector<16x128xf32>
    %13 = arith.mulf %12, %12 : vector<16x128xf32>
    %cst_10 = arith.constant dense<0.000000e+00> : vector<16xf32>
    %14 = vector.multi_reduction <add>, %13, %cst_10 [1] : vector<16x128xf32> to vector<16xf32>
    %15 = vector.shape_cast %14 : vector<16xf32> to vector<16x1xf32>
    %cst_11 = arith.constant 1.000000e-24 : f32
    %16 = vector.broadcast %cst_11 : f32 to vector<16x1xf32>
    %17 = arith.maximumf %15, %16 : vector<16x1xf32>
    %18 = math.rsqrt %17 : vector<16x1xf32>
    %19 = vector.broadcast %18 : vector<16x1xf32> to vector<16x128xf32>
    %20 = arith.mulf %12, %19 : vector<16x128xf32>
    %c0_12 = arith.constant 0 : index
    %c0_13 = arith.constant 0 : index
    %21 = vector.load %arg6[%c0_12, %c0_13] : memref<16x128xf32, #tpu.memory_space<vmem>>, vector<16x128xf32>
    tpu.vector_store %arg6[%c0_12, %c0_13], %20 {strides = array<i32>} : memref<16x128xf32, #tpu.memory_space<vmem>>, vector<16x128xf32>,
    return
  }
  func.func @transform_0(%arg0: i32) -> (i32, i32) {
    %c0_i32 = arith.constant 0 : i32
    %c0_i32_0 = arith.constant 0 : i32
    return %arg0, %c0_i32 : i32, i32
  }
  func.func @transform_1(%arg0: i32) -> (i32, i32) {
    %c0_i32 = arith.constant 0 : i32
    %c0_i32_0 = arith.constant 0 : i32
    %c0_i32_1 = arith.constant 0 : i32
    return %c0_i32, %c0_i32_0 : i32, i32
  }
  func.func @transform_2(%arg0: i32) -> (i32, i32) {
    %c0_i32 = arith.constant 0 : i32
    %c0_i32_0 = arith.constant 0 : i32
    %c0_i32_1 = arith.constant 0 : i32
    return %c0_i32, %c0_i32_0 : i32, i32
  }
  func.func @transform_3(%arg0: i32) -> (i32, i32) {
    %c0_i32 = arith.constant 0 : i32
    %c0_i32_0 = arith.constant 0 : i32
    %c0_i32_1 = arith.constant 0 : i32
    return %c0_i32, %c0_i32_0 : i32, i32
  }
  func.func @transform_4(%arg0: i32) -> (i32, i32) {
    %c0_i32 = arith.constant 0 : i32
    %c0_i32_0 = arith.constant 0 : i32
    %c0_i32_1 = arith.constant 0 : i32
    return %c0_i32, %c0_i32_0 : i32, i32
  }
  func.func @transform_5(%arg0: i32) -> (i32, i32) {
    %c0_i32 = arith.constant 0 : i32
    %c0_i32_0 = arith.constant 0 : i32
    return %arg0, %c0_i32 : i32, i32
  }
}

module attributes {stable_mosaic.version = 11 : i64} {
  func.func @_encode_kernel(%arg0: i32, %arg1: memref<16x128xbf16, #tpu.memory_space<vmem>>, %arg2: memref<128x128xbf16, #tpu.memory_space<vmem>>, %arg3: memref<1x128xf32, #tpu.memory_space<vmem>>, %arg4: memref<128x128xbf16, #tpu.memory_space<vmem>>, %arg5: memref<1x128xf32, #tpu.memory_space<vmem>>, %arg6: memref<16x128xf32, #tpu.memory_space<vmem>>) attributes {dimension_semantics = [#tpu.dimension_semantics<parallel>], iteration_bounds = array<i64: 1>, scalar_prefetch = 0 : i64, scratch_operands = 0 : i64, tpu.core_type = #tpu.core_type<tc>, window_params = [{transform_indices = @transform_0, window_bounds = array<i64: 16, 128>}, {pipeline_mode = #tpu.pipeline_mode<synchronous>, transform_indices = @transform_1, window_bounds = array<i64: 128, 128>}, {pipeline_mode = #tpu.pipeline_mode<synchronous>, transform_indices = @transform_2, window_bounds = array<i64: 1, 128>}, {pipeline_mode = #tpu.pipeline_mode<synchronous>, transform_indices = @transform_3, window_bounds = array<i64: 128, 128>}, {pipeline_mode = #tpu.pipeline_mode<synchronous>, transform_indices = @transform_4, window_bounds = array<i64: 1, 128>}, {transform_indices = @transform_5, window_bounds = array<i64: 16, 128>}]} {
    %c0 = arith.constant 0 : index
    %c0_0 = arith.constant 0 : index
    %0 = vector.load %arg1[%c0, %c0_0] : memref<16x128xbf16, #tpu.memory_space<vmem>>, vector<16x128xbf16>
    %c0_1 = arith.constant 0 : index
    %c0_2 = arith.constant 0 : index
    %1 = vector.load %arg2[%c0_1, %c0_2] : memref<128x128xbf16, #tpu.memory_space<vmem>>, vector<128x128xbf16>
    %cst = arith.constant dense<0.000000e+00> : vector<16x128xf32>
    %2 = tpu.matmul %0, %1, %cst {dimension_numbers = #tpu.dot_dimension_numbers<[1], [0], [0], [1], [0, 0, 1, 1], [], []>} : vector<16x128xbf16>, vector<128x128xbf16>, vector<16x128xf32> -> vector<16x128xf32>
    %c0_3 = arith.constant 0 : index
    %c0_4 = arith.constant 0 : index
    %3 = vector.load %arg3[%c0_3, %c0_4] : memref<1x128xf32, #tpu.memory_space<vmem>>, vector<1x128xf32>
    %4 = vector.broadcast %3 : vector<1x128xf32> to vector<16x128xf32>
    %5 = arith.addf %2, %4 : vector<16x128xf32>
    %6 = math.tanh %5 : vector<16x128xf32>
    %7 = arith.truncf %6 : vector<16x128xf32> to vector<16x128xbf16>
    %c0_5 = arith.constant 0 : index
    %c0_6 = arith.constant 0 : index
    %8 = vector.load %arg4[%c0_5, %c0_6] : memref<128x128xbf16, #tpu.memory_space<vmem>>, vector<128x128xbf16>
    %cst_7 = arith.constant dense<0.000000e+00> : vector<16x128xf32>
    %9 = tpu.matmul %7, %8, %cst_7 {dimension_numbers = #tpu.dot_dimension_numbers<[1], [0], [0], [1], [0, 0, 1, 1], [], []>} : vector<16x128xbf16>, vector<128x128xbf16>, vector<16x128xf32> -> vector<16x128xf32>
    %c0_8 = arith.constant 0 : index
    %c0_9 = arith.constant 0 : index
    %10 = vector.load %arg5[%c0_8, %c0_9] : memref<1x128xf32, #tpu.memory_space<vmem>>, vector<1x128xf32>
    %11 = vector.broadcast %10 : vector<1x128xf32> to vector<16x128xf32>
    %12 = arith.addf %9, %11 : vector<16x128xf32>
    %13 = arith.mulf %12, %12 : vector<16x128xf32>
    %cst_10 = arith.constant dense<0.000000e+00> : vector<16xf32>
    %14 = vector.multi_reduction <add>, %13, %cst_10 [1] : vector<16x128xf32> to vector<16xf32>
    %15 = vector.shape_cast %14 : vector<16xf32> to vector<16x1xf32>
    %cst_11 = arith.constant 1.000000e-24 : f32
    %16 = vector.broadcast %cst_11 : f32 to vector<16x1xf32>
    %17 = arith.maximumf %15, %16 : vector<16x1xf32>
    %18 = math.rsqrt %17 : vector<16x1xf32>
    %19 = vector.broadcast %18 : vector<16x1xf32> to vector<16x128xf32>
    %20 = arith.mulf %12, %19 : vector<16x128xf32>
    %c0_12 = arith.constant 0 : index
    %c0_13 = arith.constant 0 : index
    %21 = vector.load %arg6[%c0_12, %c0_13] : memref<16x128xf32, #tpu.memory_space<vmem>>, vector<16x128xf32>
    tpu.vector_store %arg6[%c0_12, %c0_13], %20 {strides = array<i32>} : memref<16x128xf32, #tpu.memory_space<vmem>>, vector<16x128xf32>,
    return
  }
  func.func @transform_0(%arg0: i32) -> (i32, i32) {
    %c0_i32 = arith.constant 0 : i32
    %c0_i32_0 = arith.constant 0 : i32
    return %arg0, %c0_i32 : i32, i32
  }
  func.func @transform_1(%arg0: i32) -> (i32, i32) {
    %c0_i32 = arith.constant 0 : i32
    %c0_i32_0 = arith.constant 0 : i32
    %c0_i32_1 = arith.constant 0 : i32
    return %c0_i32, %c0_i32_0 : i32, i32
  }
  func.func @transform_2(%arg0: i32) -> (i32, i32) {
    %c0_i32 = arith.constant 0 : i32
    %c0_i32_0 = arith.constant 0 : i32
    %c0_i32_1 = arith.constant 0 : i32
    return %c0_i32, %c0_i32_0 : i32, i32
  }
  func.func @transform_3(%arg0: i32) -> (i32, i32) {
    %c0_i32 = arith.constant 0 : i32
    %c0_i32_0 = arith.constant 0 : i32
    %c0_i32_1 = arith.constant 0 : i32
    return %c0_i32, %c0_i32_0 : i32, i32
  }
  func.func @transform_4(%arg0: i32) -> (i32, i32) {
    %c0_i32 = arith.constant 0 : i32
    %c0_i32_0 = arith.constant 0 : i32
    %c0_i32_1 = arith.constant 0 : i32
    return %c0_i32, %c0_i32_0 : i32, i32
  }
  func.func @transform_5(%arg0: i32) -> (i32, i32) {
    %c0_i32 = arith.constant 0 : i32
    %c0_i32_0 = arith.constant 0 : i32
    return %arg0, %c0_i32 : i32, i32
  }
}

</mosaic_0001>

<llo_original>
// kernel: tpu_custom_call.1
$region0: #{tpu_custom_call.1}
  #allocation0 [shape = 'u32[]', space=smem, size = 0x4, offset = 0x4, fixed_abs, tag = 'smem constant byte address 0x4 - core index']
  #allocation1 [shape = 'u32[144,128]{1,0:T(1,128)}', space=vmem, size = 0x12000, scoped, tag = 'internal scratch']
  %s0 = inlined_call_operand.hbm [shape: bf16[16,128], index: 0, kind: input, shape index: {}]
  %s1 = inlined_call_operand.hbm [shape: bf16[128,128], index: 1, kind: input, shape index: {}]
  %s2 = inlined_call_operand.vmem [shape: f32[1,128], index: 2, kind: input, shape index: {}]
  %s3 = inlined_call_operand.hbm [shape: bf16[128,128], index: 3, kind: input, shape index: {}]
  %s4 = inlined_call_operand.vmem [shape: f32[1,128], index: 4, kind: input, shape index: {}]
  %s5 = inlined_call_operand.hbm [shape: f32[16,128], index: 5, kind: output, shape index: {}]
  %s6 = sld [smem:[#allocation0]]
  $region42: #{tpu_custom_call.1} parent=0
    _
  %s8 = ssub.s32 1, %s6
  %s9 = scalar_select 0, %s8, %s6
  $region1: #{tpu_custom_call.1} parent=0
    #allocation2 [shape = 'u8[4096]{0}', space=vmem, size = 0x1000, scoped, tag = 'input window, operand 0, single buffered']
    #allocation3 [shape = 's32[1]{0}', space=sflag, size = 0x4, scoped, tag = 'scoped memory for tpu_custom_call.1']
    #allocation4 [shape = 's32[1]{0}', space=sflag, size = 0x4, scoped, tag = 'scoped memory for tpu_custom_call.1']
    #allocation5 [shape = 'u8[32768]{0}', space=vmem, size = 0x8000, scoped, tag = 'input window, operand 1, single buffered']
    #allocation6 [shape = 's32[1]{0}', space=sflag, size = 0x4, scoped, tag = 'scoped memory for tpu_custom_call.1']
    #allocation7 [shape = 'u8[32768]{0}', space=vmem, size = 0x8000, scoped, tag = 'input window, operand 3, single buffered']
    #allocation8 [shape = 'u8[8192]{0}', space=vmem, size = 0x2000, scoped, tag = 'output window, operand 0, single buffered']
    %10 = vsyncpa [#allocation3], 0
    %11 = vsyncpa [#allocation6], 0
    %12 = vsyncpa [#allocation4], 0
    // Predicated region
    $region2: #{tpu_custom_call.1} parent=1 // pred_check
      _
    $region3: #{tpu_custom_call.1} parent=1 // pred_check_branch
      %14 = sbr.rel (0) target = $region5
    $region4: #{tpu_custom_call.1} parent=1 // pred_region
      %s16 = ssub.s32 128, 128
      %17 = vsyncadd [#allocation3], %s16
      %s18 = sshll.u32 [#allocation2], 4
      %s19 = int_to_ptr.vmem [resolvable:$true] %s18
      %24 = dma.hbm_to_vmem [thread:$0]  %s0, 128, %s19, [#allocation3], 64, 64, 4
    $region5: #{tpu_custom_call.1} parent=1 // pred_fallthru
      _
    // Predicated region
    $region6: #{tpu_custom_call.1} parent=1 // pred_check
      _
    $region7: #{tpu_custom_call.1} parent=1 // pred_check_branch
      %26 = sbr.rel (0) target = $region9
    $region8: #{tpu_custom_call.1} parent=1 // pred_region
      %s28 = ssub.s32 1024, 1024
      %29 = vsyncadd [#allocation6], %s28
      %s30 = sshll.u32 [#allocation5], 4
      %s31 = int_to_ptr.vmem [resolvable:$true] %s30
      %36 = dma.hbm_to_vmem [thread:$0]  %s1, 1024, %s31, [#allocation6], 64, 64, 4
    $region9: #{tpu_custom_call.1} parent=1 // pred_fallthru
      _
    // Predicated region
    $region10: #{tpu_custom_call.1} parent=1 // pred_check
      _
    $region11: #{tpu_custom_call.1} parent=1 // pred_check_branch
      %38 = sbr.rel (0) target = $region13
    $region12: #{tpu_custom_call.1} parent=1 // pred_region
      _
    $region13: #{tpu_custom_call.1} parent=1 // pred_fallthru
      _
    // Predicated region
    $region14: #{tpu_custom_call.1} parent=1 // pred_check
      _
    $region15: #{tpu_custom_call.1} parent=1 // pred_check_branch
      %40 = sbr.rel (0) target = $region17
    $region16: #{tpu_custom_call.1} parent=1 // pred_region
      %s42 = ssub.s32 1024, 1024
      %43 = vsyncadd [#allocation6], %s42
      %s44 = sshll.u32 [#allocation7], 4
      %s45 = int_to_ptr.vmem [resolvable:$true] %s44
      %50 = dma.hbm_to_vmem [thread:$0]  %s3, 1024, %s45, [#allocation6], 64, 64, 4
    $region17: #{tpu_custom_call.1} parent=1 // pred_fallthru
      _
    // Predicated region
    $region18: #{tpu_custom_call.1} parent=1 // pred_check
      _
    $region19: #{tpu_custom_call.1} parent=1 // pred_check_branch
      %52 = sbr.rel (0) target = $region21
    $region20: #{tpu_custom_call.1} parent=1 // pred_region
      _
    $region21: #{tpu_custom_call.1} parent=1 // pred_fallthru
      _
    // Predicated region
    $region22: #{tpu_custom_call.1} parent=1 // pred_check
      _
    $region23: #{tpu_custom_call.1} parent=1 // pred_check_branch
      %54 = sbr.rel (0) target = $region25
    $region24: #{tpu_custom_call.1} parent=1 // pred_region
      %55 = dma.done [#allocation3], 128
    $region25: #{tpu_custom_call.1} parent=1 // pred_fallthru
      _
    // Predicated region
    $region26: #{tpu_custom_call.1} parent=1 // pred_check
      _
    $region27: #{tpu_custom_call.1} parent=1 // pred_check_branch
      %57 = sbr.rel (0) target = $region29
    $region28: #{tpu_custom_call.1} parent=1 // pred_region
      %58 = dma.done [#allocation6], 1024
    $region29: #{tpu_custom_call.1} parent=1 // pred_fallthru
      _
    // Predicated region
    $region30: #{tpu_custom_call.1} parent=1 // pred_check
      _
    $region31: #{tpu_custom_call.1} parent=1 // pred_check_branch
      %60 = sbr.rel (0) target = $region33
    $region32: #{tpu_custom_call.1} parent=1 // pred_region
      %61 = dma.done [#allocation6], 1024
    $region33: #{tpu_custom_call.1} parent=1 // pred_fallthru
      _
    %v63 = vld [vmem:[#allocation2] sm:$0xf]
    %v64 = vld [vmem:[#allocation2 + $0x4] sm:$0xf]
    %v65 = vld [vmem:[#allocation5] sm:$0xf]
    %v66 = vld [vmem:[#allocation5 + $0x4] sm:$0xf]
    %v67 = vld [vmem:[#allocation5 + $0x8] sm:$0xf]
    %v68 = vld [vmem:[#allocation5 + $0xc] sm:$0xf]
    %v69 = vld [vmem:[#allocation5 + $0x10] sm:$0xf]
    %v70 = vld [vmem:[#allocation5 + $0x14] sm:$0xf]
    %v71 = vld [vmem:[#allocation5 + $0x18] sm:$0xf]
    %v72 = vld [vmem:[#allocation5 + $0x1c] sm:$0xf]
    %v73 = vld [vmem:[#allocation5 + $0x20] sm:$0xf]
    %v74 = vld [vmem:[#allocation5 + $0x24] sm:$0xf]
    %v75 = vld [vmem:[#allocation5 + $0x28] sm:$0xf]
    %v76 = vld [vmem:[#allocation5 + $0x2c] sm:$0xf]
    %v77 = vld [vmem:[#allocation5 + $0x30] sm:$0xf]
    %v78 = vld [vmem:[#allocation5 + $0x34] sm:$0xf]
    %v79 = vld [vmem:[#allocation5 + $0x38] sm:$0xf]
    %v80 = vld [vmem:[#allocation5 + $0x3c] sm:$0xf]
    %v81 = vld [vmem:[%s2] sm:$0x1]
    %v83 = vlaneseq
    %v84 = vshrl.u32 %v83, 7
    %v85 = vsub.s32 0, %v84
    %v86 = vrot.slane %v81, %v85
    %v90 = vunpack.c.l.b16 %v63
    %v91 = vunpack.c.l.b16 %v64
    %v92 = vpack.c.b16 %v91, %v90
    %v110 = vunpack.c.l.b16 %v65
    %v111 = vunpack.c.l.b16 %v66
    %v112 = vunpack.c.l.b16 %v67
    %v113 = vunpack.c.l.b16 %v68
    %v114 = vunpack.c.l.b16 %v69
    %v115 = vunpack.c.l.b16 %v70
    %v116 = vunpack.c.l.b16 %v71
    %v117 = vunpack.c.l.b16 %v72
    %v118 = vunpack.c.l.b16 %v73
    %v119 = vunpack.c.l.b16 %v74
    %v120 = vunpack.c.l.b16 %v75
    %v121 = vunpack.c.l.b16 %v76
    %v122 = vunpack.c.l.b16 %v77
    %v123 = vunpack.c.l.b16 %v78
    %v124 = vunpack.c.l.b16 %v79
    %v125 = vunpack.c.l.b16 %v80
    %v126 = vpack.c.b16 %v111, %v110
    %v127 = vpack.c.b16 %v113, %v112
    %v128 = vpack.c.b16 %v115, %v114
    %v129 = vpack.c.b16 %v117, %v116
    %v130 = vpack.c.b16 %v119, %v118
    %v131 = vpack.c.b16 %v121, %v120
    %v132 = vpack.c.b16 %v123, %v122
    %v133 = vpack.c.b16 %v125, %v124
    %142 = vmatprep.subr.bf16.mxu0 0
    %143 = vmatpush1.bf16.msra.mxu0 %v133
    %144 = vmatprep.subr.bf16.mxu0 0
    %145 = vmatpush1.bf16.msra.mxu0 %v132
    %146 = vmatprep.subr.bf16.mxu0 0
    %147 = vmatpush1.bf16.msra.mxu0 %v131
    %148 = vmatprep.subr.bf16.mxu0 0
    %149 = vmatpush1.bf16.msra.mxu0 %v130
    %150 = vmatprep.subr.bf16.mxu0 0
    %151 = vmatpush1.bf16.msra.mxu0 %v129
    %152 = vmatprep.subr.bf16.mxu0 0
    %153 = vmatpush1.bf16.msra.mxu0 %v128
    %154 = vmatprep.subr.bf16.mxu0 0
    %155 = vmatpush1.bf16.msra.mxu0 %v127
    %156 = vmatprep.subr.bf16.mxu0 0
    %157 = vmatpush1.bf16.msra.mxu0 %v126
    %158 = vmatprep.subr.bf16.mxu0 0
    %159 = vmatpush2.bf16.msra.mxu0 0
    %160 = vmatprep.subr.bf16.mxu0 0
    %161 = vmatpush2.bf16.msra.mxu0 0
    %162 = vmatprep.subr.bf16.mxu0 0
    %163 = vmatpush2.bf16.msra.mxu0 0
    %164 = vmatprep.subr.bf16.mxu0 0
    %165 = vmatpush2.bf16.msra.mxu0 0
    %166 = vmatprep.subr.bf16.mxu0 0
    %167 = vmatpush2.bf16.msra.mxu0 0
    %168 = vmatprep.subr.bf16.mxu0 0
    %169 = vmatpush2.bf16.msra.mxu0 0
    %170 = vmatprep.subr.bf16.mxu0 0
    %171 = vmatpush2.bf16.msra.mxu0 0
    %172 = vmatprep.subr.bf16.mxu0 0
    %173 = vmatpush2.bf16.msra.mxu0 0
    %174 = vmatprep.mubr.bf16.mxu0 0
    %175 = vmatmul.mubr.bf16.gmra.mxu0 %v92
    %v176 = vpop.f32.mrf.mxu0
    %v177 = vadd.f32 %v86, %v176
    %v178 = vpop.f32.mrf.mxu0
    %v179 = vpop.f32.mrf.mxu0
    %v180 = vadd.f32 %v86, %v179
    %v181 = vpop.f32.mrf.mxu0
    %182 = vdwg.mxu0
    %v183 = vtanh.pop %v177
    %v184 = vtanh.pop %v180
    %v185 = vpack.c.bf16 %v184, %v183
    %v186 = vld [vmem:[#allocation7] sm:$0xf]
    %v187 = vld [vmem:[#allocation7 + $0x4] sm:$0xf]
    %v188 = vld [vmem:[#allocation7 + $0x8] sm:$0xf]
    %v189 = vld [vmem:[#allocation7 + $0xc] sm:$0xf]
    %v190 = vld [vmem:[#allocation7 + $0x10] sm:$0xf]
    %v191 = vld [vmem:[#allocation7 + $0x14] sm:$0xf]
    %v192 = vld [vmem:[#allocation7 + $0x18] sm:$0xf]
    %v193 = vld [vmem:[#allocation7 + $0x1c] sm:$0xf]
    %v194 = vld [vmem:[#allocation7 + $0x20] sm:$0xf]
    %v195 = vld [vmem:[#allocation7 + $0x24] sm:$0xf]
    %v196 = vld [vmem:[#allocation7 + $0x28] sm:$0xf]
    %v197 = vld [vmem:[#allocation7 + $0x2c] sm:$0xf]
    %v198 = vld [vmem:[#allocation7 + $0x30] sm:$0xf]
    %v199 = vld [vmem:[#allocation7 + $0x34] sm:$0xf]
    %v200 = vld [vmem:[#allocation7 + $0x38] sm:$0xf]
    %v201 = vld [vmem:[#allocation7 + $0x3c] sm:$0xf]
    %v202 = vld [vmem:[%s4] sm:$0x1]
    %v204 = vlaneseq
    %v205 = vshrl.u32 %v204, 7
    %v206 = vsub.s32 0, %v205
    %v207 = vrot.slane %v202, %v206
    %v225 = vunpack.c.l.b16 %v186
    %v226 = vunpack.c.l.b16 %v187
    %v227 = vunpack.c.l.b16 %v188
    %v228 = vunpack.c.l.b16 %v189
    %v229 = vunpack.c.l.b16 %v190
    %v230 = vunpack.c.l.b16 %v191
    %v231 = vunpack.c.l.b16 %v192
    %v232 = vunpack.c.l.b16 %v193
    %v233 = vunpack.c.l.b16 %v194
    %v234 = vunpack.c.l.b16 %v195
    %v235 = vunpack.c.l.b16 %v196
    %v236 = vunpack.c.l.b16 %v197
    %v237 = vunpack.c.l.b16 %v198
    %v238 = vunpack.c.l.b16 %v199
    %v239 = vunpack.c.l.b16 %v200
    %v240 = vunpack.c.l.b16 %v201
    %v241 = vpack.c.b16 %v226, %v225
    %v242 = vpack.c.b16 %v228, %v227
    %v243 = vpack.c.b16 %v230, %v229
    %v244 = vpack.c.b16 %v232, %v231
    %v245 = vpack.c.b16 %v234, %v233
    %v246 = vpack.c.b16 %v236, %v235
    %v247 = vpack.c.b16 %v238, %v237
    %v248 = vpack.c.b16 %v240, %v239
    %257 = vmatprep.subr.bf16.mxu0 0
    %258 = vmatpush1.bf16.msra.mxu0 %v248
    %259 = vmatprep.subr.bf16.mxu0 0
    %260 = vmatpush1.bf16.msra.mxu0 %v247
    %261 = vmatprep.subr.bf16.mxu0 0
    %262 = vmatpush1.bf16.msra.mxu0 %v246
    %263 = vmatprep.subr.bf16.mxu0 0
    %264 = vmatpush1.bf16.msra.mxu0 %v245
    %265 = vmatprep.subr.bf16.mxu0 0
    %266 = vmatpush1.bf16.msra.mxu0 %v244
    %267 = vmatprep.subr.bf16.mxu0 0
    %268 = vmatpush1.bf16.msra.mxu0 %v243
    %269 = vmatprep.subr.bf16.mxu0 0
    %270 = vmatpush1.bf16.msra.mxu0 %v242
    %271 = vmatprep.subr.bf16.mxu0 0
    %272 = vmatpush1.bf16.msra.mxu0 %v241
    %273 = vmatprep.subr.bf16.mxu0 0
    %274 = vmatpush2.bf16.msra.mxu0 0
    %275 = vmatprep.subr.bf16.mxu0 0
    %276 = vmatpush2.bf16.msra.mxu0 0
    %277 = vmatprep.subr.bf16.mxu0 0
    %278 = vmatpush2.bf16.msra.mxu0 0
    %279 = vmatprep.subr.bf16.mxu0 0
    %280 = vmatpush2.bf16.msra.mxu0 0
    %281 = vmatprep.subr.bf16.mxu0 0
    %282 = vmatpush2.bf16.msra.mxu0 0
    %283 = vmatprep.subr.bf16.mxu0 0
    %284 = vmatpush2.bf16.msra.mxu0 0
    %285 = vmatprep.subr.bf16.mxu0 0
    %286 = vmatpush2.bf16.msra.mxu0 0
    %287 = vmatprep.subr.bf16.mxu0 0
    %288 = vmatpush2.bf16.msra.mxu0 0
    %289 = vmatprep.mubr.bf16.mxu0 0
    %290 = vmatmul.mubr.bf16.gmra.mxu0 %v185
    %v291 = vpop.f32.mrf.mxu0
    %v292 = vadd.f32 %v207, %v291
    %v293 = vpop.f32.mrf.mxu0
    %v294 = vpop.f32.mrf.mxu0
    %v295 = vadd.f32 %v207, %v294
    %v296 = vpop.f32.mrf.mxu0
    %297 = vdwg.mxu0
    %v298 = vmul.f32 %v292, %v292
    %v299 = vmul.f32 %v295, %v295
    %300 = vadd.xlane.f32.xlu0 %v298
    %v301 = vpop.xlane.xlu0 %300
    %302 = vadd.xlane.f32.xlu0 %v299
    %v303 = vpop.xlane.xlu0 %302
    %v304 = vmax.f32 %v301, 1e-24
    %v305 = vmax.f32 %v303, 1e-24
    %v306 = vrsqrt.pop %v304
    %v307 = vrsqrt.pop %v305
    %v308 = vmul.f32 %v292, %v306
    %v309 = vmul.f32 %v295, %v307
    %310 = vst [vmem:[#allocation8] sm:$0xff] %v308
    %311 = vst [vmem:[#allocation8 + $0x8] sm:$0xff] %v309
    // Predicated region
    $region34: #{tpu_custom_call.1} parent=1 // pred_check
      _
    $region35: #{tpu_custom_call.1} parent=1 // pred_check_branch
      %313 = sbr.rel (0) target = $region37
    $region36: #{tpu_custom_call.1} parent=1 // pred_region
      %s315 = ssub.s32 256, 256
      %316 = vsyncadd [#allocation4], %s315
      %s317 = sshll.u32 [#allocation8], 4
      %s318 = int_to_ptr.vmem [resolvable:$true] %s317
      %323 = dma.vmem_to_hbm [thread:$0]  %s318, 256, %s5, [#allocation4], 128, 128, 8
    $region37: #{tpu_custom_call.1} parent=1 // pred_fallthru
      _
    // Predicated region
    $region38: #{tpu_custom_call.1} parent=1 // pred_check
      _
    $region39: #{tpu_custom_call.1} parent=1 // pred_check_branch
      %325 = sbr.rel (0) target = $region41
    $region40: #{tpu_custom_call.1} parent=1 // pred_region
      %326 = dma.done [#allocation4], 256
    $region41: #{tpu_custom_call.1} parent=1 // pred_fallthru
      _
    %327 = vsyncpa [#allocation3], 1
    %328 = vsyncpa [#allocation6], 1
    %329 = vsyncpa [#allocation4], 1

// kernel: tpu_custom_call.1
$region0: #{tpu_custom_call.1}
  #allocation0 [shape = 'u32[]', space=smem, size = 0x4, offset = 0x4, fixed_abs, tag = 'smem constant byte address 0x4 - core index']
  #allocation1 [shape = 'u32[144,128]{1,0:T(1,128)}', space=vmem, size = 0x12000, scoped, tag = 'internal scratch']
  %s0 = inlined_call_operand.hbm [shape: bf16[16,128], index: 0, kind: input, shape index: {}]
  %s1 = inlined_call_operand.hbm [shape: bf16[128,128], index: 1, kind: input, shape index: {}]
  %s2 = inlined_call_operand.vmem [shape: f32[1,128], index: 2, kind: input, shape index: {}]
  %s3 = inlined_call_operand.hbm [shape: bf16[128,128], index: 3, kind: input, shape index: {}]
  %s4 = inlined_call_operand.vmem [shape: f32[1,128], index: 4, kind: input, shape index: {}]
  %s5 = inlined_call_operand.hbm [shape: f32[16,128], index: 5, kind: output, shape index: {}]
  %s6 = sld [smem:[#allocation0]]
  $region42: #{tpu_custom_call.1} parent=0
    _
  %s8 = ssub.s32 1, %s6
  %s9 = scalar_select 0, %s8, %s6
  $region1: #{tpu_custom_call.1} parent=0
    #allocation2 [shape = 'u8[4096]{0}', space=vmem, size = 0x1000, scoped, tag = 'input window, operand 0, single buffered']
    #allocation3 [shape = 's32[1]{0}', space=sflag, size = 0x4, scoped, tag = 'scoped memory for tpu_custom_call.1']
    #allocation4 [shape = 's32[1]{0}', space=sflag, size = 0x4, scoped, tag = 'scoped memory for tpu_custom_call.1']
    #allocation5 [shape = 'u8[32768]{0}', space=vmem, size = 0x8000, scoped, tag = 'input window, operand 1, single buffered']
    #allocation6 [shape = 's32[1]{0}', space=sflag, size = 0x4, scoped, tag = 'scoped memory for tpu_custom_call.1']
    #allocation7 [shape = 'u8[32768]{0}', space=vmem, size = 0x8000, scoped, tag = 'input window, operand 3, single buffered']
    #allocation8 [shape = 'u8[8192]{0}', space=vmem, size = 0x2000, scoped, tag = 'output window, operand 0, single buffered']
    %10 = vsyncpa [#allocation3], 0
    %11 = vsyncpa [#allocation6], 0
    %12 = vsyncpa [#allocation4], 0
    // Predicated region
    $region2: #{tpu_custom_call.1} parent=1 // pred_check
      _
    $region3: #{tpu_custom_call.1} parent=1 // pred_check_branch
      %14 = sbr.rel (0) target = $region5
    $region4: #{tpu_custom_call.1} parent=1 // pred_region
      %s16 = ssub.s32 128, 128
      %17 = vsyncadd [#allocation3], %s16
      %s18 = sshll.u32 [#allocation2], 4
      %s19 = int_to_ptr.vmem [resolvable:$true] %s18
      %24 = dma.hbm_to_vmem [thread:$0]  %s0, 128, %s19, [#allocation3], 64, 64, 4
    $region5: #{tpu_custom_call.1} parent=1 // pred_fallthru
      _
    // Predicated region
    $region6: #{tpu_custom_call.1} parent=1 // pred_check
      _
    $region7: #{tpu_custom_call.1} parent=1 // pred_check_branch
      %26 = sbr.rel (0) target = $region9
    $region8: #{tpu_custom_call.1} parent=1 // pred_region
      %s28 = ssub.s32 1024, 1024
      %29 = vsyncadd [#allocation6], %s28
      %s30 = sshll.u32 [#allocation5], 4
      %s31 = int_to_ptr.vmem [resolvable:$true] %s30
      %36 = dma.hbm_to_vmem [thread:$0]  %s1, 1024, %s31, [#allocation6], 64, 64, 4
    $region9: #{tpu_custom_call.1} parent=1 // pred_fallthru
      _
    // Predicated region
    $region10: #{tpu_custom_call.1} parent=1 // pred_check
      _
    $region11: #{tpu_custom_call.1} parent=1 // pred_check_branch
      %38 = sbr.rel (0) target = $region13
    $region12: #{tpu_custom_call.1} parent=1 // pred_region
      _
    $region13: #{tpu_custom_call.1} parent=1 // pred_fallthru
      _
    // Predicated region
    $region14: #{tpu_custom_call.1} parent=1 // pred_check
      _
    $region15: #{tpu_custom_call.1} parent=1 // pred_check_branch
      %40 = sbr.rel (0) target = $region17
    $region16: #{tpu_custom_call.1} parent=1 // pred_region
      %s42 = ssub.s32 1024, 1024
      %43 = vsyncadd [#allocation6], %s42
      %s44 = sshll.u32 [#allocation7], 4
      %s45 = int_to_ptr.vmem [resolvable:$true] %s44
      %50 = dma.hbm_to_vmem [thread:$0]  %s3, 1024, %s45, [#allocation6], 64, 64, 4
    $region17: #{tpu_custom_call.1} parent=1 // pred_fallthru
      _
    // Predicated region
    $region18: #{tpu_custom_call.1} parent=1 // pred_check
      _
    $region19: #{tpu_custom_call.1} parent=1 // pred_check_branch
      %52 = sbr.rel (0) target = $region21
    $region20: #{tpu_custom_call.1} parent=1 // pred_region
      _
    $region21: #{tpu_custom_call.1} parent=1 // pred_fallthru
      _
    // Predicated region
    $region22: #{tpu_custom_call.1} parent=1 // pred_check
      _
    $region23: #{tpu_custom_call.1} parent=1 // pred_check_branch
      %54 = sbr.rel (0) target = $region25
    $region24: #{tpu_custom_call.1} parent=1 // pred_region
      %55 = dma.done [#allocation3], 128
    $region25: #{tpu_custom_call.1} parent=1 // pred_fallthru
      _
    // Predicated region
    $region26: #{tpu_custom_call.1} parent=1 // pred_check
      _
    $region27: #{tpu_custom_call.1} parent=1 // pred_check_branch
      %57 = sbr.rel (0) target = $region29
    $region28: #{tpu_custom_call.1} parent=1 // pred_region
      %58 = dma.done [#allocation6], 1024
    $region29: #{tpu_custom_call.1} parent=1 // pred_fallthru
      _
    // Predicated region
    $region30: #{tpu_custom_call.1} parent=1 // pred_check
      _
    $region31: #{tpu_custom_call.1} parent=1 // pred_check_branch
      %60 = sbr.rel (0) target = $region33
    $region32: #{tpu_custom_call.1} parent=1 // pred_region
      %61 = dma.done [#allocation6], 1024
    $region33: #{tpu_custom_call.1} parent=1 // pred_fallthru
      _
    %v63 = vld [vmem:[#allocation2] sm:$0xf]
    %v64 = vld [vmem:[#allocation2 + $0x4] sm:$0xf]
    %v65 = vld [vmem:[#allocation5] sm:$0xf]
    %v66 = vld [vmem:[#allocation5 + $0x4] sm:$0xf]
    %v67 = vld [vmem:[#allocation5 + $0x8] sm:$0xf]
    %v68 = vld [vmem:[#allocation5 + $0xc] sm:$0xf]
    %v69 = vld [vmem:[#allocation5 + $0x10] sm:$0xf]
    %v70 = vld [vmem:[#allocation5 + $0x14] sm:$0xf]
    %v71 = vld [vmem:[#allocation5 + $0x18] sm:$0xf]
    %v72 = vld [vmem:[#allocation5 + $0x1c] sm:$0xf]
    %v73 = vld [vmem:[#allocation5 + $0x20] sm:$0xf]
    %v74 = vld [vmem:[#allocation5 + $0x24] sm:$0xf]
    %v75 = vld [vmem:[#allocation5 + $0x28] sm:$0xf]
    %v76 = vld [vmem:[#allocation5 + $0x2c] sm:$0xf]
    %v77 = vld [vmem:[#allocation5 + $0x30] sm:$0xf]
    %v78 = vld [vmem:[#allocation5 + $0x34] sm:$0xf]
    %v79 = vld [vmem:[#allocation5 + $0x38] sm:$0xf]
    %v80 = vld [vmem:[#allocation5 + $0x3c] sm:$0xf]
    %v81 = vld [vmem:[%s2] sm:$0x1]
    %v83 = vlaneseq
    %v84 = vshrl.u32 %v83, 7
    %v85 = vsub.s32 0, %v84
    %v86 = vrot.slane %v81, %v85
    %v90 = vunpack.c.l.b16 %v63
    %v91 = vunpack.c.l.b16 %v64
    %v92 = vpack.c.b16 %v91, %v90
    %v110 = vunpack.c.l.b16 %v65
    %v111 = vunpack.c.l.b16 %v66
    %v112 = vunpack.c.l.b16 %v67
    %v113 = vunpack.c.l.b16 %v68
    %v114 = vunpack.c.l.b16 %v69
    %v115 = vunpack.c.l.b16 %v70
    %v116 = vunpack.c.l.b16 %v71
    %v117 = vunpack.c.l.b16 %v72
    %v118 = vunpack.c.l.b16 %v73
    %v119 = vunpack.c.l.b16 %v74
    %v120 = vunpack.c.l.b16 %v75
    %v121 = vunpack.c.l.b16 %v76
    %v122 = vunpack.c.l.b16 %v77
    %v123 = vunpack.c.l.b16 %v78
    %v124 = vunpack.c.l.b16 %v79
    %v125 = vunpack.c.l.b16 %v80
    %v126 = vpack.c.b16 %v111, %v110
    %v127 = vpack.c.b16 %v113, %v112
    %v128 = vpack.c.b16 %v115, %v114
    %v129 = vpack.c.b16 %v117, %v116
    %v130 = vpack.c.b16 %v119, %v118
    %v131 = vpack.c.b16 %v121, %v120
    %v132 = vpack.c.b16 %v123, %v122
    %v133 = vpack.c.b16 %v125, %v124
    %142 = vmatprep.subr.bf16.mxu0 0
    %143 = vmatpush1.bf16.msra.mxu0 %v133
    %144 = vmatprep.subr.bf16.mxu0 0
    %145 = vmatpush1.bf16.msra.mxu0 %v132
    %146 = vmatprep.subr.bf16.mxu0 0
    %147 = vmatpush1.bf16.msra.mxu0 %v131
    %148 = vmatprep.subr.bf16.mxu0 0
    %149 = vmatpush1.bf16.msra.mxu0 %v130
    %150 = vmatprep.subr.bf16.mxu0 0
    %151 = vmatpush1.bf16.msra.mxu0 %v129
    %152 = vmatprep.subr.bf16.mxu0 0
    %153 = vmatpush1.bf16.msra.mxu0 %v128
    %154 = vmatprep.subr.bf16.mxu0 0
    %155 = vmatpush1.bf16.msra.mxu0 %v127
    %156 = vmatprep.subr.bf16.mxu0 0
    %157 = vmatpush1.bf16.msra.mxu0 %v126
    %158 = vmatprep.subr.bf16.mxu0 0
    %159 = vmatpush2.bf16.msra.mxu0 0
    %160 = vmatprep.subr.bf16.mxu0 0
    %161 = vmatpush2.bf16.msra.mxu0 0
    %162 = vmatprep.subr.bf16.mxu0 0
    %163 = vmatpush2.bf16.msra.mxu0 0
    %164 = vmatprep.subr.bf16.mxu0 0
    %165 = vmatpush2.bf16.msra.mxu0 0
    %166 = vmatprep.subr.bf16.mxu0 0
    %167 = vmatpush2.bf16.msra.mxu0 0
    %168 = vmatprep.subr.bf16.mxu0 0
    %169 = vmatpush2.bf16.msra.mxu0 0
    %170 = vmatprep.subr.bf16.mxu0 0
    %171 = vmatpush2.bf16.msra.mxu0 0
    %172 = vmatprep.subr.bf16.mxu0 0
    %173 = vmatpush2.bf16.msra.mxu0 0
    %174 = vmatprep.mubr.bf16.mxu0 0
    %175 = vmatmul.mubr.bf16.gmra.mxu0 %v92
    %v176 = vpop.f32.mrf.mxu0
    %v177 = vadd.f32 %v86, %v176
    %v178 = vpop.f32.mrf.mxu0
    %v179 = vpop.f32.mrf.mxu0
    %v180 = vadd.f32 %v86, %v179
    %v181 = vpop.f32.mrf.mxu0
    %182 = vdwg.mxu0
    %v183 = vtanh.pop %v177
    %v184 = vtanh.pop %v180
    %v185 = vpack.c.bf16 %v184, %v183
    %v186 = vld [vmem:[#allocation7] sm:$0xf]
    %v187 = vld [vmem:[#allocation7 + $0x4] sm:$0xf]
    %v188 = vld [vmem:[#allocation7 + $0x8] sm:$0xf]
    %v189 = vld [vmem:[#allocation7 + $0xc] sm:$0xf]
    %v190 = vld [vmem:[#allocation7 + $0x10] sm:$0xf]
    %v191 = vld [vmem:[#allocation7 + $0x14] sm:$0xf]
    %v192 = vld [vmem:[#allocation7 + $0x18] sm:$0xf]
    %v193 = vld [vmem:[#allocation7 + $0x1c] sm:$0xf]
    %v194 = vld [vmem:[#allocation7 + $0x20] sm:$0xf]
    %v195 = vld [vmem:[#allocation7 + $0x24] sm:$0xf]
    %v196 = vld [vmem:[#allocation7 + $0x28] sm:$0xf]
    %v197 = vld [vmem:[#allocation7 + $0x2c] sm:$0xf]
    %v198 = vld [vmem:[#allocation7 + $0x30] sm:$0xf]
    %v199 = vld [vmem:[#allocation7 + $0x34] sm:$0xf]
    %v200 = vld [vmem:[#allocation7 + $0x38] sm:$0xf]
    %v201 = vld [vmem:[#allocation7 + $0x3c] sm:$0xf]
    %v202 = vld [vmem:[%s4] sm:$0x1]
    %v204 = vlaneseq
    %v205 = vshrl.u32 %v204, 7
    %v206 = vsub.s32 0, %v205
    %v207 = vrot.slane %v202, %v206
    %v225 = vunpack.c.l.b16 %v186
    %v226 = vunpack.c.l.b16 %v187
    %v227 = vunpack.c.l.b16 %v188
    %v228 = vunpack.c.l.b16 %v189
    %v229 = vunpack.c.l.b16 %v190
    %v230 = vunpack.c.l.b16 %v191
    %v231 = vunpack.c.l.b16 %v192
    %v232 = vunpack.c.l.b16 %v193
    %v233 = vunpack.c.l.b16 %v194
    %v234 = vunpack.c.l.b16 %v195
    %v235 = vunpack.c.l.b16 %v196
    %v236 = vunpack.c.l.b16 %v197
    %v237 = vunpack.c.l.b16 %v198
    %v238 = vunpack.c.l.b16 %v199
    %v239 = vunpack.c.l.b16 %v200
    %v240 = vunpack.c.l.b16 %v201
    %v241 = vpack.c.b16 %v226, %v225
    %v242 = vpack.c.b16 %v228, %v227
    %v243 = vpack.c.b16 %v230, %v229
    %v244 = vpack.c.b16 %v232, %v231
    %v245 = vpack.c.b16 %v234, %v233
    %v246 = vpack.c.b16 %v236, %v235
    %v247 = vpack.c.b16 %v238, %v237
    %v248 = vpack.c.b16 %v240, %v239
    %257 = vmatprep.subr.bf16.mxu0 0
    %258 = vmatpush1.bf16.msra.mxu0 %v248
    %259 = vmatprep.subr.bf16.mxu0 0
    %260 = vmatpush1.bf16.msra.mxu0 %v247
    %261 = vmatprep.subr.bf16.mxu0 0
    %262 = vmatpush1.bf16.msra.mxu0 %v246
    %263 = vmatprep.subr.bf16.mxu0 0
    %264 = vmatpush1.bf16.msra.mxu0 %v245
    %265 = vmatprep.subr.bf16.mxu0 0
    %266 = vmatpush1.bf16.msra.mxu0 %v244
    %267 = vmatprep.subr.bf16.mxu0 0
    %268 = vmatpush1.bf16.msra.mxu0 %v243
    %269 = vmatprep.subr.bf16.mxu0 0
    %270 = vmatpush1.bf16.msra.mxu0 %v242
    %271 = vmatprep.subr.bf16.mxu0 0
    %272 = vmatpush1.bf16.msra.mxu0 %v241
    %273 = vmatprep.subr.bf16.mxu0 0
    %274 = vmatpush2.bf16.msra.mxu0 0
    %275 = vmatprep.subr.bf16.mxu0 0
    %276 = vmatpush2.bf16.msra.mxu0 0
    %277 = vmatprep.subr.bf16.mxu0 0
    %278 = vmatpush2.bf16.msra.mxu0 0
    %279 = vmatprep.subr.bf16.mxu0 0
    %280 = vmatpush2.bf16.msra.mxu0 0
    %281 = vmatprep.subr.bf16.mxu0 0
    %282 = vmatpush2.bf16.msra.mxu0 0
    %283 = vmatprep.subr.bf16.mxu0 0
    %284 = vmatpush2.bf16.msra.mxu0 0
    %285 = vmatprep.subr.bf16.mxu0 0
    %286 = vmatpush2.bf16.msra.mxu0 0
    %287 = vmatprep.subr.bf16.mxu0 0
    %288 = vmatpush2.bf16.msra.mxu0 0
    %289 = vmatprep.mubr.bf16.mxu0 0
    %290 = vmatmul.mubr.bf16.gmra.mxu0 %v185
    %v291 = vpop.f32.mrf.mxu0
    %v292 = vadd.f32 %v207, %v291
    %v293 = vpop.f32.mrf.mxu0
    %v294 = vpop.f32.mrf.mxu0
    %v295 = vadd.f32 %v207, %v294
    %v296 = vpop.f32.mrf.mxu0
    %297 = vdwg.mxu0
    %v298 = vmul.f32 %v292, %v292
    %v299 = vmul.f32 %v295, %v295
    %300 = vadd.xlane.f32.xlu0 %v298
    %v301 = vpop.xlane.xlu0 %300
    %302 = vadd.xlane.f32.xlu0 %v299
    %v303 = vpop.xlane.xlu0 %302
    %v304 = vmax.f32 %v301, 1e-24
    %v305 = vmax.f32 %v303, 1e-24
    %v306 = vrsqrt.pop %v304
    %v307 = vrsqrt.pop %v305
    %v308 = vmul.f32 %v292, %v306
    %v309 = vmul.f32 %v295, %v307
    %310 = vst [vmem:[#allocation8] sm:$0xff] %v308
    %311 = vst [vmem:[#allocation8 + $0x8] sm:$0xff] %v309
    // Predicated region
    $region34: #{tpu_custom_call.1} parent=1 // pred_check
      _
    $region35: #{tpu_custom_call.1} parent=1 // pred_check_branch
      %313 = sbr.rel (0) target = $region37
    $region36: #{tpu_custom_call.1} parent=1 // pred_region
      %s315 = ssub.s32 256, 256
      %316 = vsyncadd [#allocation4], %s315
      %s317 = sshll.u32 [#allocation8], 4
      %s318 = int_to_ptr.vmem [resolvable:$true] %s317
      %323 = dma.vmem_to_hbm [thread:$0]  %s318, 256, %s5, [#allocation4], 128, 128, 8
    $region37: #{tpu_custom_call.1} parent=1 // pred_fallthru
      _
    // Predicated region
    $region38: #{tpu_custom_call.1} parent=1 // pred_check
      _
    $region39: #{tpu_custom_call.1} parent=1 // pred_check_branch
      %325 = sbr.rel (0) target = $region41
    $region40: #{tpu_custom_call.1} parent=1 // pred_region
      %326 = dma.done [#allocation4], 256
    $region41: #{tpu_custom_call.1} parent=1 // pred_fallthru
      _
    %327 = vsyncpa [#allocation3], 1
    %328 = vsyncpa [#allocation6], 1
    %329 = vsyncpa [#allocation4], 1

</llo_original>
